<compile_context>
chip_gen: v7x
topology: tpu7x:2x2x1
jax: 0.10.0
libtpu: 0.0.40
codegen_flags: <defaults>
</compile_context>

<pallas_src>
import functools

import jax
import jax.numpy as jnp
from jax import lax
from jax.experimental import pallas as pl
from jax.experimental.pallas import tpu as pltpu

_NEG_SLOPE = 0.01  # torch.nn.LeakyReLU default


# --------------------------------------------------------------------------- #
# Kernels
# --------------------------------------------------------------------------- #
def _gat_rows_kernel(x_ref, v_ref, adj_ref, b_ref, o_ref, *, ti, n_ichunks):
    """Batch-on-sublanes layout. Blocks: x/v/out (TB, N), adj (N, N), bias (1, N).

    out[b, j] = sum_i softmax_j(leaky(x[b,i]*v[b,j]+bias[j])) * mask[i,j] * x[b,i]
    The i (softmax-row) axis is chunked (size ti) to bound live (TB, ti, N) temps.
    """
    v_blk = v_ref[...]                    # (TB, N)
    bias = b_ref[...]                     # (1, N)

    def accumulate(x_c, adj_c, acc):
        # x_c: (TB, ti), adj_c: (ti, N)
        lin = x_c[:, :, None] * v_blk[:, None, :] + bias[None, :, :]   # (TB, ti, N)
        act = jnp.where(lin >= 0.0, lin, _NEG_SLOPE * lin)
        m = jnp.max(act, axis=-1, keepdims=True)
        e = jnp.exp(act - m)                                           # (TB, ti, N)
        denom = jnp.sum(e, axis=-1)                                    # (TB, ti)
        # Fold softmax normalization and the final x multiply into one small
        # per-(b, i) scale.  Exact divide: the (TB, ti) reciprocal is tiny.
        s = x_c / denom                                                # (TB, ti)
        w = e * adj_c[None, :, :]                                      # (TB, ti, N)
        return acc + jnp.sum(s[:, :, None] * w, axis=1)                # (TB, N)

    zeros = jnp.zeros(o_ref.shape, jnp.float32)
    if n_ichunks == 1:
        out = accumulate(x_ref[...], adj_ref[...], zeros)
    else:
        def body(ic, acc):
            i0 = pl.multiple_of(ic * ti, ti)
            return accumulate(x_ref[:, pl.ds(i0, ti)],
                              adj_ref[pl.ds(i0, ti), :], acc)
        out = lax.fori_loop(0, n_ichunks, body, zeros)
    o_ref[...] = out.astype(o_ref.dtype)


def _gat_lanes_kernel(xT_ref, vT_ref, adj_ref, b_ref, o_ref):
    """Batch-on-lanes layout for small N / large B.  Blocks: xT/vT/out (N, TB),
    adj (N, N), bias (N, 1).  All VPU/EUP ops are lane-dense, stores unmasked."""
    xT = xT_ref[...]                      # (N, TB)
    vT = vT_ref[...]                      # (N, TB)
    adj = adj_ref[...]                    # (N, N)
    bias = b_ref[...]                     # (N, 1)

    lin = xT[:, None, :] * vT[None, :, :] + bias[None, :, :]           # (Ni, Nj, TB)
    act = jnp.where(lin >= 0.0, lin, _NEG_SLOPE * lin)
    m = jnp.max(act, axis=1, keepdims=True)                            # (Ni, 1, TB)
    e = jnp.exp(act - m)                                               # (Ni, Nj, TB)
    denom = jnp.sum(e, axis=1)                                         # (Ni, TB)
    s = xT / denom                                                     # (Ni, TB)
    w = e * adj[:, :, None]                                            # (Ni, Nj, TB)
    o_ref[...] = jnp.sum(s[:, None, :] * w, axis=0).astype(o_ref.dtype)  # (Nj, TB)


# --------------------------------------------------------------------------- #
# Wrapper
# --------------------------------------------------------------------------- #
def _round_up(a, b):
    return (a + b - 1) // b * b


def _vmem_capacity_bytes():
    try:
        info = pltpu.get_tpu_info()
        for name in ("vmem_capacity_bytes", "vmem_size_bytes", "vmem_bytes"):
            cap = getattr(info, name, None)
            if cap:
                return int(cap)
    except Exception:
        pass
    return 64 * 1024 * 1024   # conservative fallback (v7x per-core VMEM)


def gat_forward(x, adj, w_fc, b_fc):
    """x: (B, N), adj: (N, N), w_fc: (N, N) torch-Linear weight (out, in),
    b_fc: (N,). Returns torch.squeeze of the (B, 1, N) output."""
    f32 = jnp.float32
    B, N = x.shape
    x = x.astype(f32)

    # --- adjacency preprocessing (matches torch exactly) ---------------------
    adj_soft = jax.nn.softmax(adj.astype(f32), axis=-1)
    # TODO(synk): global lower median (torch.Tensor.median) has no Pallas/Mosaic
    # selection primitive; computed in plain JAX via top_k selection (cheaper
    # than a full flat sort at large N).
    n_total = N * N
    k = n_total - (n_total - 1) // 2           # rank-from-top of the lower median
    med = lax.top_k(adj_soft.reshape(-1), k)[0][-1]
    adj_mask = (adj_soft > med).astype(f32)

    # --- hoisted Linear: one well-shaped (B,N)@(N,N) MXU matmul in XLA -------
    v = jnp.einsum("bk,jk->bj", x, w_fc.astype(f32), preferred_element_type=f32)

    # --- VMEM-aware tiling ----------------------------------------------------
    vmem_cap = _vmem_capacity_bytes()
    temp_budget = max(vmem_cap // 3, 8 * 1024 * 1024)        # live rank-3 temps
    vmem_limit = min(vmem_cap * 3 // 4, 100 * 1024 * 1024)   # scoped VMEM limit

    # Resident adjacency mask: single-buffer it when it is big (v7x VMEM budget).
    if N * N * 4 >= (2 << 20):
        adj_spec = pl.BlockSpec((N, N), lambda b: (0, 0), pipeline_mode=pl.Buffered(1))
    else:
        adj_spec = pl.BlockSpec((N, N), lambda b: (0, 0))

    use_lane_batch = (N <= 32) and (B >= 128)

    if use_lane_batch:
        # ---- batch on lanes: blocks (N, TB); fully lane-dense for tiny N ----
        bytes_per_lane = 3 * N * N * 4
        tb = max(128, (temp_budget // max(bytes_per_lane, 1)) // 128 * 128)
        tb = min(tb, 2048, _round_up(B, 128))
        n_steps = pl.cdiv(B, tb)
        bp = n_steps * tb

        xT = x.T                                              # (N, B)
        vT = v.T
        if bp != B:
            pad = ((0, 0), (0, bp - B))
            xT = jnp.pad(xT, pad)
            vT = jnp.pad(vT, pad)

        out_t = pl.pallas_call(
            _gat_lanes_kernel,
            out_shape=jax.ShapeDtypeStruct((N, bp), f32),
            grid_spec=pltpu.PrefetchScalarGridSpec(
                num_scalar_prefetch=0,
                grid=(n_steps,),
                in_specs=[
                    pl.BlockSpec((N, tb), lambda b: (0, b)),   # x^T
                    pl.BlockSpec((N, tb), lambda b: (0, b)),   # v^T
                    adj_spec,                                  # adjacency mask
                    pl.BlockSpec((N, 1), lambda b: (0, 0)),    # fc bias (column)
                ],
                out_specs=pl.BlockSpec((N, tb), lambda b: (0, b)),
            ),
            compiler_params=pltpu.CompilerParams(
                dimension_semantics=("parallel",),
                vmem_limit_bytes=vmem_limit),
        )(xT, vT, adj_mask, b_fc.astype(f32).reshape(N, 1))
        out = out_t.T[:B]
    else:
        # ---- batch on sublanes: blocks (TB, N); single step for small B -----
        def temp_bytes(tb_, ti_):
            return 3 * tb_ * ti_ * N * 4

        tb = min(_round_up(B, 8), 512)
        ti = N
        # Prefer chunking the softmax i axis (keeps sublanes full at large N,
        # bounds live temps for v7x's 64 MiB VMEM); only then shrink tb.
        if N % 128 == 0:
            while ti > 128 and ti % 256 == 0 and temp_bytes(tb, ti) > temp_budget:
                ti //= 2
        while tb > 8 and temp_bytes(tb, ti) > temp_budget:
            tb = max(8, _round_up(tb // 2, 8))

        n_steps = pl.cdiv(B, tb)
        bp = n_steps * tb

        x_p, v_p = x, v
        if bp != B:
            pad = ((0, bp - B), (0, 0))
            x_p = jnp.pad(x_p, pad)
            v_p = jnp.pad(v_p, pad)

        kernel = functools.partial(_gat_rows_kernel, ti=ti, n_ichunks=N // ti)
        out = pl.pallas_call(
            kernel,
            out_shape=jax.ShapeDtypeStruct((bp, N), f32),
            grid_spec=pltpu.PrefetchScalarGridSpec(
                num_scalar_prefetch=0,
                grid=(n_steps,),
                in_specs=[
                    pl.BlockSpec((tb, N), lambda b: (b, 0)),   # x rows
                    pl.BlockSpec((tb, N), lambda b: (b, 0)),   # v = x @ W^T rows
                    adj_spec,                                  # adjacency mask
                    pl.BlockSpec((1, N), lambda b: (0, 0)),    # fc bias
                ],
                out_specs=pl.BlockSpec((tb, N), lambda b: (b, 0)),
            ),
            compiler_params=pltpu.CompilerParams(
                dimension_semantics=("parallel",),
                vmem_limit_bytes=vmem_limit),
        )(x_p, v_p, adj_mask, b_fc.astype(f32).reshape(1, N))
        out = out[:B]

    # torch.squeeze removes all size-1 dims (so (N,) when B == 1)
    return jnp.squeeze(out)


# --------------------------------------------------------------------------- #
# Pure-JAX reference mirroring the PyTorch forward
# --------------------------------------------------------------------------- #
def _reference(x, adj, w_fc, b_fc):
    N = adj.shape[0]
    adj_soft = jax.nn.softmax(adj, axis=-1)
    med = jnp.sort(adj_soft.reshape(-1))[(N * N - 1) // 2]     # lower median
    adj_mask = (adj_soft > med).astype(jnp.float32)
    outer = x[:, :, None] * x[:, None, :]                      # (B, N, N)
    lin = jnp.einsum("bik,jk->bij", outer, w_fc) + b_fc
    act = jnp.where(lin >= 0.0, lin, _NEG_SLOPE * lin)
    w = jax.nn.softmax(act, axis=-1) * adj_mask[None]
    return jnp.einsum("bi,bij->bj", x, w)


if __name__ == "__main__":
    B, N = 16, 16   # node_num = 16
    key = jax.random.PRNGKey(0)
    kx, kadj, kw, kb = jax.random.split(key, 4)

    x = jax.random.normal(kx, (B, N), dtype=jnp.float32)
    adj = jax.random.normal(kadj, (N, N), dtype=jnp.float32)

    # Deterministic nn.Linear(N, N) init (PyTorch-style U(-1/sqrt(N), 1/sqrt(N)))
    bound = 1.0 / (N ** 0.5)
    w_fc = jax.random.uniform(kw, (N, N), jnp.float32, -bound, bound)
    b_fc = jax.random.uniform(kb, (N,), jnp.float32, -bound, bound)

    out = jax.block_until_ready(gat_forward(x, adj, w_fc, b_fc))
    ref = _reference(x, adj, w_fc, b_fc)

    assert out.shape == (B, N), out.shape
    assert jnp.allclose(out, ref, rtol=1e-4, atol=1e-4), \
        float(jnp.max(jnp.abs(out - ref)))
    print("KERNEL_OK")
</pallas_src>

<mosaic_0001>
module attributes {stable_mosaic.version = 11 : i64} {
  func.func @_gat_rows_kernel(%arg0: i32, %arg1: memref<16x16xf32, #tpu.memory_space<vmem>>, %arg2: memref<16x16xf32, #tpu.memory_space<vmem>>, %arg3: memref<16x16xf32, #tpu.memory_space<vmem>>, %arg4: memref<1x16xf32, #tpu.memory_space<vmem>>, %arg5: memref<16x16xf32, #tpu.memory_space<vmem>>) attributes {dimension_semantics = [#tpu.dimension_semantics<parallel>], iteration_bounds = array<i64: 1>, scalar_prefetch = 0 : i64, scratch_operands = 0 : i64, tpu.core_type = #tpu.core_type<tc>, window_params = [{transform_indices = @transform_0, window_bounds = array<i64: 16, 16>}, {transform_indices = @transform_1, window_bounds = array<i64: 16, 16>}, {pipeline_mode = #tpu.pipeline_mode<synchronous>, transform_indices = @transform_2, window_bounds = array<i64: 16, 16>}, {pipeline_mode = #tpu.pipeline_mode<synchronous>, transform_indices = @transform_3, window_bounds = array<i64: 1, 16>}, {transform_indices = @transform_4, window_bounds = array<i64: 16, 16>}]} {
    %c0 = arith.constant 0 : index
    %c0_0 = arith.constant 0 : index
    %0 = vector.load %arg2[%c0, %c0_0] : memref<16x16xf32, #tpu.memory_space<vmem>>, vector<16x16xf32>
    %c0_1 = arith.constant 0 : index
    %c0_2 = arith.constant 0 : index
    %1 = vector.load %arg4[%c0_1, %c0_2] : memref<1x16xf32, #tpu.memory_space<vmem>>, vector<1x16xf32>
    %cst = arith.constant 0.000000e+00 : f32
    %2 = vector.broadcast %cst : f32 to vector<16x16xf32>
    %c0_3 = arith.constant 0 : index
    %c0_4 = arith.constant 0 : index
    %3 = vector.load %arg1[%c0_3, %c0_4] : memref<16x16xf32, #tpu.memory_space<vmem>>, vector<16x16xf32>
    %c0_5 = arith.constant 0 : index
    %c0_6 = arith.constant 0 : index
    %4 = vector.load %arg3[%c0_5, %c0_6] : memref<16x16xf32, #tpu.memory_space<vmem>>, vector<16x16xf32>
    %5 = vector.shape_cast %3 : vector<16x16xf32> to vector<16x16x1xf32>
    %6 = vector.shape_cast %0 : vector<16x16xf32> to vector<16x1x16xf32>
    %7 = vector.broadcast %5 : vector<16x16x1xf32> to vector<16x16x16xf32>
    %8 = vector.broadcast %6 : vector<16x1x16xf32> to vector<16x16x16xf32>
    %9 = arith.mulf %7, %8 : vector<16x16x16xf32>
    %10 = vector.shape_cast %1 : vector<1x16xf32> to vector<1x1x16xf32>
    %11 = vector.broadcast %10 : vector<1x1x16xf32> to vector<16x16x16xf32>
    %12 = arith.addf %9, %11 : vector<16x16x16xf32>
    %cst_7 = arith.constant 0.000000e+00 : f32
    %13 = vector.broadcast %cst_7 : f32 to vector<16x16x16xf32>
    %14 = arith.cmpf oge, %12, %13 : vector<16x16x16xf32>
    %cst_8 = arith.constant 0.00999999977 : f32
    %15 = vector.broadcast %cst_8 : f32 to vector<16x16x16xf32>
    %16 = arith.mulf %15, %12 : vector<16x16x16xf32>
    %17 = arith.select %14, %12, %16 : vector<16x16x16xi1>, vector<16x16x16xf32>
    %cst_9 = arith.constant dense<0xFF800000> : vector<16x16xf32>
    %18 = vector.multi_reduction <maximumf>, %17, %cst_9 [2] : vector<16x16x16xf32> to vector<16x16xf32>
    %19 = vector.shape_cast %18 : vector<16x16xf32> to vector<16x16x1xf32>
    %20 = vector.broadcast %19 : vector<16x16x1xf32> to vector<16x16x16xf32>
    %21 = arith.subf %17, %20 : vector<16x16x16xf32>
    %22 = math.exp %21 : vector<16x16x16xf32>
    %cst_10 = arith.constant dense<0.000000e+00> : vector<16x16xf32>
    %23 = vector.multi_reduction <add>, %22, %cst_10 [2] : vector<16x16x16xf32> to vector<16x16xf32>
    %24 = arith.divf %3, %23 : vector<16x16xf32>
    %25 = vector.shape_cast %4 : vector<16x16xf32> to vector<1x16x16xf32>
    %26 = vector.broadcast %25 : vector<1x16x16xf32> to vector<16x16x16xf32>
    %27 = arith.mulf %22, %26 : vector<16x16x16xf32>
    %28 = vector.shape_cast %24 : vector<16x16xf32> to vector<16x16x1xf32>
    %29 = vector.broadcast %28 : vector<16x16x1xf32> to vector<16x16x16xf32>
    %30 = arith.mulf %29, %27 : vector<16x16x16xf32>
    %cst_11 = arith.constant dense<0.000000e+00> : vector<16x16xf32>
    %31 = vector.multi_reduction <add>, %30, %cst_11 [1] : vector<16x16x16xf32> to vector<16x16xf32>
    %32 = arith.addf %2, %31 : vector<16x16xf32>
    %c0_12 = arith.constant 0 : index
    %c0_13 = arith.constant 0 : index
    %33 = vector.load %arg5[%c0_12, %c0_13] : memref<16x16xf32, #tpu.memory_space<vmem>>, vector<16x16xf32>
    tpu.vector_store %arg5[%c0_12, %c0_13], %32 {strides = array<i32>} : memref<16x16xf32, #tpu.memory_space<vmem>>, vector<16x16xf32>,
    return
  }
  func.func @transform_0(%arg0: i32) -> (i32, i32) {
    %c0_i32 = arith.constant 0 : i32
    %c0_i32_0 = arith.constant 0 : i32
    return %arg0, %c0_i32 : i32, i32
  }
  func.func @transform_1(%arg0: i32) -> (i32, i32) {
    %c0_i32 = arith.constant 0 : i32
    %c0_i32_0 = arith.constant 0 : i32
    return %arg0, %c0_i32 : i32, i32
  }
  func.func @transform_2(%arg0: i32) -> (i32, i32) {
    %c0_i32 = arith.constant 0 : i32
    %c0_i32_0 = arith.constant 0 : i32
    %c0_i32_1 = arith.constant 0 : i32
    return %c0_i32, %c0_i32_0 : i32, i32
  }
  func.func @transform_3(%arg0: i32) -> (i32, i32) {
    %c0_i32 = arith.constant 0 : i32
    %c0_i32_0 = arith.constant 0 : i32
    %c0_i32_1 = arith.constant 0 : i32
    return %c0_i32, %c0_i32_0 : i32, i32
  }
  func.func @transform_4(%arg0: i32) -> (i32, i32) {
    %c0_i32 = arith.constant 0 : i32
    %c0_i32_0 = arith.constant 0 : i32
    return %arg0, %c0_i32 : i32, i32
  }
}

</mosaic_0001>

<llo_original>
// kernel: tpu_custom_call.1
$region0: #{tpu_custom_call.1}
  #allocation0 [shape = 'u32[]', space=smem, size = 0x4, offset = 0x4, fixed_abs, tag = 'smem constant byte address 0x4 - core index']
  #allocation1 [shape = 'u32[144,128]{1,0:T(1,128)}', space=vmem, size = 0x12000, scoped, tag = 'internal scratch']
  %s0 = inlined_call_operand.hbm [shape: f32[16,16], index: 0, kind: input, shape index: {}]
  %s1 = inlined_call_operand.hbm [shape: f32[16,16], index: 1, kind: input, shape index: {}]
  %s2 = inlined_call_operand.hbm [shape: f32[16,16], index: 2, kind: input, shape index: {}]
  %s3 = inlined_call_operand.vmem [shape: f32[1,16], index: 3, kind: input, shape index: {}]
  %s4 = inlined_call_operand.hbm [shape: f32[16,16], index: 4, kind: output, shape index: {}]
  %s5 = sld [smem:[#allocation0]]
  $region38: #{tpu_custom_call.1} parent=0
    _
  %s7 = ssub.s32 1, %s5
  %s8 = scalar_select 0, %s7, %s5
  $region1: #{tpu_custom_call.1} parent=0
    #allocation2 [shape = 'u8[8192]{0}', space=vmem, size = 0x2000, scoped, tag = 'input window, operand 0, single buffered']
    #allocation3 [shape = 's32[1]{0}', space=sflag, size = 0x4, scoped, tag = 'scoped memory for tpu_custom_call.1']
    #allocation4 [shape = 's32[1]{0}', space=sflag, size = 0x4, scoped, tag = 'scoped memory for tpu_custom_call.1']
    #allocation5 [shape = 'u8[8192]{0}', space=vmem, size = 0x2000, scoped, tag = 'input window, operand 1, single buffered']
    #allocation6 [shape = 's32[1]{0}', space=sflag, size = 0x4, scoped, tag = 'scoped memory for tpu_custom_call.1']
    #allocation7 [shape = 'u8[8192]{0}', space=vmem, size = 0x2000, scoped, tag = 'input window, operand 2, single buffered']
    #allocation8 [shape = 'u8[8192]{0}', space=vmem, size = 0x2000, scoped, tag = 'output window, operand 0, single buffered']
    %9 = vsyncpa [#allocation3], 0
    %10 = vsyncpa [#allocation6], 0
    %11 = vsyncpa [#allocation4], 0
    // Predicated region
    $region2: #{tpu_custom_call.1} parent=1 // pred_check
      _
    $region3: #{tpu_custom_call.1} parent=1 // pred_check_branch
      %13 = sbr.rel (0) target = $region5
    $region4: #{tpu_custom_call.1} parent=1 // pred_region
      %s15 = ssub.s32 256, 256
      %16 = vsyncadd [#allocation3], %s15
      %s17 = sshll.u32 [#allocation2], 4
      %s18 = int_to_ptr.vmem [resolvable:$true] %s17
      %23 = dma.hbm_to_vmem [thread:$0]  %s0, 256, %s18, [#allocation3], 128, 128, 8
    $region5: #{tpu_custom_call.1} parent=1 // pred_fallthru
      _
    // Predicated region
    $region6: #{tpu_custom_call.1} parent=1 // pred_check
      _
    $region7: #{tpu_custom_call.1} parent=1 // pred_check_branch
      %25 = sbr.rel (0) target = $region9
    $region8: #{tpu_custom_call.1} parent=1 // pred_region
      %s27 = ssub.s32 256, 256
      %28 = vsyncadd [#allocation6], %s27
      %s29 = sshll.u32 [#allocation5], 4
      %s30 = int_to_ptr.vmem [resolvable:$true] %s29
      %35 = dma.hbm_to_vmem [thread:$0]  %s1, 256, %s30, [#allocation6], 128, 128, 8
    $region9: #{tpu_custom_call.1} parent=1 // pred_fallthru
      _
    // Predicated region
    $region10: #{tpu_custom_call.1} parent=1 // pred_check
      _
    $region11: #{tpu_custom_call.1} parent=1 // pred_check_branch
      %37 = sbr.rel (0) target = $region13
    $region12: #{tpu_custom_call.1} parent=1 // pred_region
      %s39 = ssub.s32 256, 256
      %40 = vsyncadd [#allocation6], %s39
      %s41 = sshll.u32 [#allocation7], 4
      %s42 = int_to_ptr.vmem [resolvable:$true] %s41
      %47 = dma.hbm_to_vmem [thread:$0]  %s2, 256, %s42, [#allocation6], 128, 128, 8
    $region13: #{tpu_custom_call.1} parent=1 // pred_fallthru
      _
    // Predicated region
    $region14: #{tpu_custom_call.1} parent=1 // pred_check
      _
    $region15: #{tpu_custom_call.1} parent=1 // pred_check_branch
      %49 = sbr.rel (0) target = $region17
    $region16: #{tpu_custom_call.1} parent=1 // pred_region
      _
    $region17: #{tpu_custom_call.1} parent=1 // pred_fallthru
      _
    // Predicated region
    $region18: #{tpu_custom_call.1} parent=1 // pred_check
      _
    $region19: #{tpu_custom_call.1} parent=1 // pred_check_branch
      %51 = sbr.rel (0) target = $region21
    $region20: #{tpu_custom_call.1} parent=1 // pred_region
      %52 = dma.done [#allocation3], 256
    $region21: #{tpu_custom_call.1} parent=1 // pred_fallthru
      _
    // Predicated region
    $region22: #{tpu_custom_call.1} parent=1 // pred_check
      _
    $region23: #{tpu_custom_call.1} parent=1 // pred_check_branch
      %54 = sbr.rel (0) target = $region25
    $region24: #{tpu_custom_call.1} parent=1 // pred_region
      %55 = dma.done [#allocation6], 256
    $region25: #{tpu_custom_call.1} parent=1 // pred_fallthru
      _
    // Predicated region
    $region26: #{tpu_custom_call.1} parent=1 // pred_check
      _
    $region27: #{tpu_custom_call.1} parent=1 // pred_check_branch
      %57 = sbr.rel (0) target = $region29
    $region28: #{tpu_custom_call.1} parent=1 // pred_region
      %58 = dma.done [#allocation6], 256
    $region29: #{tpu_custom_call.1} parent=1 // pred_fallthru
      _
    %v59 = vld [vmem:[#allocation5] sm:$0xff]
    %v60 = vld [vmem:[#allocation5 + $0x8] sm:$0xff]
    %v61 = vld [vmem:[%s3] sm:$0x1]
    %v62 = vld [vmem:[#allocation2] sm:$0xff]
    %v63 = vld [vmem:[#allocation2 + $0x8] sm:$0xff]
    %v64 = vld [vmem:[#allocation7] sm:$0xff]
    %v65 = vld [vmem:[#allocation7 + $0x8] sm:$0xff]
    %v66 = vlaneseq
    %v67 = vshrl.u32 %v66, 7
    %v68 = vsub.s32 0, %v67
    %v69 = vrot.slane %v62, %v68
    %71 = vbcast.lane.b32.xlu0 %v69, 256
    %v72 = vpop.permute.xlu0 %71
    %s74 = sor.u32 256, 8
    %75 = vbcast.lane.b32.xlu0 %v69, %s74
    %v76 = vpop.permute.xlu0 %75
    %v77 = vlaneseq
    %v78 = vshrl.u32 %v77, 7
    %v79 = vsub.s32 1, %v78
    %v80 = vrot.slane %v62, %v79
    %82 = vbcast.lane.b32.xlu0 %v80, 256
    %v83 = vpop.permute.xlu0 %82
    %s85 = sor.u32 256, 8
    %86 = vbcast.lane.b32.xlu0 %v80, %s85
    %v87 = vpop.permute.xlu0 %86
    %v88 = vlaneseq
    %v89 = vshrl.u32 %v88, 7
    %v90 = vsub.s32 2, %v89
    %v91 = vrot.slane %v62, %v90
    %93 = vbcast.lane.b32.xlu0 %v91, 256
    %v94 = vpop.permute.xlu0 %93
    %s96 = sor.u32 256, 8
    %97 = vbcast.lane.b32.xlu0 %v91, %s96
    %v98 = vpop.permute.xlu0 %97
    %v99 = vlaneseq
    %v100 = vshrl.u32 %v99, 7
    %v101 = vsub.s32 3, %v100
    %v102 = vrot.slane %v62, %v101
    %104 = vbcast.lane.b32.xlu0 %v102, 256
    %v105 = vpop.permute.xlu0 %104
    %s107 = sor.u32 256, 8
    %108 = vbcast.lane.b32.xlu0 %v102, %s107
    %v109 = vpop.permute.xlu0 %108
    %v110 = vlaneseq
    %v111 = vshrl.u32 %v110, 7
    %v112 = vsub.s32 4, %v111
    %v113 = vrot.slane %v62, %v112
    %115 = vbcast.lane.b32.xlu0 %v113, 256
    %v116 = vpop.permute.xlu0 %115
    %s118 = sor.u32 256, 8
    %119 = vbcast.lane.b32.xlu0 %v113, %s118
    %v120 = vpop.permute.xlu0 %119
    %v121 = vlaneseq
    %v122 = vshrl.u32 %v121, 7
    %v123 = vsub.s32 5, %v122
    %v124 = vrot.slane %v62, %v123
    %126 = vbcast.lane.b32.xlu0 %v124, 256
    %v127 = vpop.permute.xlu0 %126
    %s129 = sor.u32 256, 8
    %130 = vbcast.lane.b32.xlu0 %v124, %s129
    %v131 = vpop.permute.xlu0 %130
    %v132 = vlaneseq
    %v133 = vshrl.u32 %v132, 7
    %v134 = vsub.s32 6, %v133
    %v135 = vrot.slane %v62, %v134
    %137 = vbcast.lane.b32.xlu0 %v135, 256
    %v138 = vpop.permute.xlu0 %137
    %s140 = sor.u32 256, 8
    %141 = vbcast.lane.b32.xlu0 %v135, %s140
    %v142 = vpop.permute.xlu0 %141
    %v143 = vlaneseq
    %v144 = vshrl.u32 %v143, 7
    %v145 = vsub.s32 7, %v144
    %v146 = vrot.slane %v62, %v145
    %148 = vbcast.lane.b32.xlu0 %v146, 256
    %v149 = vpop.permute.xlu0 %148
    %s151 = sor.u32 256, 8
    %152 = vbcast.lane.b32.xlu0 %v146, %s151
    %v153 = vpop.permute.xlu0 %152
    %v154 = vlaneseq
    %v155 = vshrl.u32 %v154, 7
    %v156 = vsub.s32 0, %v155
    %v157 = vrot.slane %v63, %v156
    %159 = vbcast.lane.b32.xlu0 %v157, 256
    %v160 = vpop.permute.xlu0 %159
    %s162 = sor.u32 256, 8
    %163 = vbcast.lane.b32.xlu0 %v157, %s162
    %v164 = vpop.permute.xlu0 %163
    %v165 = vlaneseq
    %v166 = vshrl.u32 %v165, 7
    %v167 = vsub.s32 1, %v166
    %v168 = vrot.slane %v63, %v167
    %170 = vbcast.lane.b32.xlu0 %v168, 256
    %v171 = vpop.permute.xlu0 %170
    %s173 = sor.u32 256, 8
    %174 = vbcast.lane.b32.xlu0 %v168, %s173
    %v175 = vpop.permute.xlu0 %174
    %v176 = vlaneseq
    %v177 = vshrl.u32 %v176, 7
    %v178 = vsub.s32 2, %v177
    %v179 = vrot.slane %v63, %v178
    %181 = vbcast.lane.b32.xlu0 %v179, 256
    %v182 = vpop.permute.xlu0 %181
    %s184 = sor.u32 256, 8
    %185 = vbcast.lane.b32.xlu0 %v179, %s184
    %v186 = vpop.permute.xlu0 %185
    %v187 = vlaneseq
    %v188 = vshrl.u32 %v187, 7
    %v189 = vsub.s32 3, %v188
    %v190 = vrot.slane %v63, %v189
    %192 = vbcast.lane.b32.xlu0 %v190, 256
    %v193 = vpop.permute.xlu0 %192
    %s195 = sor.u32 256, 8
    %196 = vbcast.lane.b32.xlu0 %v190, %s195
    %v197 = vpop.permute.xlu0 %196
    %v198 = vlaneseq
    %v199 = vshrl.u32 %v198, 7
    %v200 = vsub.s32 4, %v199
    %v201 = vrot.slane %v63, %v200
    %203 = vbcast.lane.b32.xlu0 %v201, 256
    %v204 = vpop.permute.xlu0 %203
    %s206 = sor.u32 256, 8
    %207 = vbcast.lane.b32.xlu0 %v201, %s206
    %v208 = vpop.permute.xlu0 %207
    %v209 = vlaneseq
    %v210 = vshrl.u32 %v209, 7
    %v211 = vsub.s32 5, %v210
    %v212 = vrot.slane %v63, %v211
    %214 = vbcast.lane.b32.xlu0 %v212, 256
    %v215 = vpop.permute.xlu0 %214
    %s217 = sor.u32 256, 8
    %218 = vbcast.lane.b32.xlu0 %v212, %s217
    %v219 = vpop.permute.xlu0 %218
    %v220 = vlaneseq
    %v221 = vshrl.u32 %v220, 7
    %v222 = vsub.s32 6, %v221
    %v223 = vrot.slane %v63, %v222
    %225 = vbcast.lane.b32.xlu0 %v223, 256
    %v226 = vpop.permute.xlu0 %225
    %s228 = sor.u32 256, 8
    %229 = vbcast.lane.b32.xlu0 %v223, %s228
    %v230 = vpop.permute.xlu0 %229
    %v231 = vlaneseq
    %v232 = vshrl.u32 %v231, 7
    %v233 = vsub.s32 7, %v232
    %v234 = vrot.slane %v63, %v233
    %236 = vbcast.lane.b32.xlu0 %v234, 256
    %v237 = vpop.permute.xlu0 %236
    %s239 = sor.u32 256, 8
    %240 = vbcast.lane.b32.xlu0 %v234, %s239
    %v241 = vpop.permute.xlu0 %240
    %v244 = vcombine.high %v59, %v59
    %v246 = vunpack.c.l.s4 1966171168
    %v247 = vunpack.c.0.s8 %v246
    %v248 = vlaneseq
    %v249 = vshrl.u32 %v248, 7
    %v250 = vsub.s32 %v247, %v249
    %v251 = vrot.slane %v59, %v250
    %v253 = vunpack.c.l.s4 1966171168
    %v254 = vunpack.c.0.s8 %v253
    %v255 = vlaneseq
    %v256 = vshrl.u32 %v255, 7
    %v257 = vsub.s32 %v254, %v256
    %v258 = vrot.slane %v244, %v257
    %v259 = vcombine.high %v251, %v251
    %v260 = vcombine.high %v258, %v258
    %v262 = vunpack.c.l.s4 1966171168
    %v263 = vunpack.c.0.s8 %v262
    %v264 = vlaneseq
    %v265 = vshrl.u32 %v264, 7
    %v266 = vsub.s32 %v263, %v265
    %v267 = vrot.slane %v251, %v266
    %v269 = vunpack.c.l.s4 1966171168
    %v270 = vunpack.c.0.s8 %v269
    %v271 = vlaneseq
    %v272 = vshrl.u32 %v271, 7
    %v273 = vsub.s32 %v270, %v272
    %v274 = vrot.slane %v258, %v273
    %v276 = vunpack.c.l.s4 1966171168
    %v277 = vunpack.c.0.s8 %v276
    %v278 = vlaneseq
    %v279 = vshrl.u32 %v278, 7
    %v280 = vsub.s32 %v277, %v279
    %v281 = vrot.slane %v259, %v280
    %v283 = vunpack.c.l.s4 1966171168
    %v284 = vunpack.c.0.s8 %v283
    %v285 = vlaneseq
    %v286 = vshrl.u32 %v285, 7
    %v287 = vsub.s32 %v284, %v286
    %v288 = vrot.slane %v260, %v287
    %v289 = vcombine.high %v267, %v267
    %v290 = vcombine.high %v274, %v274
    %v291 = vcombine.high %v281, %v281
    %v292 = vcombine.high %v288, %v288
    %v293 = vcombine.high %v60, %v60
    %v295 = vunpack.c.l.s4 1966171168
    %v296 = vunpack.c.0.s8 %v295
    %v297 = vlaneseq
    %v298 = vshrl.u32 %v297, 7
    %v299 = vsub.s32 %v296, %v298
    %v300 = vrot.slane %v60, %v299
    %v302 = vunpack.c.l.s4 1966171168
    %v303 = vunpack.c.0.s8 %v302
    %v304 = vlaneseq
    %v305 = vshrl.u32 %v304, 7
    %v306 = vsub.s32 %v303, %v305
    %v307 = vrot.slane %v293, %v306
    %v308 = vcombine.high %v300, %v300
    %v309 = vcombine.high %v307, %v307
    %v311 = vunpack.c.l.s4 1966171168
    %v312 = vunpack.c.0.s8 %v311
    %v313 = vlaneseq
    %v314 = vshrl.u32 %v313, 7
    %v315 = vsub.s32 %v312, %v314
    %v316 = vrot.slane %v300, %v315
    %v318 = vunpack.c.l.s4 1966171168
    %v319 = vunpack.c.0.s8 %v318
    %v320 = vlaneseq
    %v321 = vshrl.u32 %v320, 7
    %v322 = vsub.s32 %v319, %v321
    %v323 = vrot.slane %v307, %v322
    %v325 = vunpack.c.l.s4 1966171168
    %v326 = vunpack.c.0.s8 %v325
    %v327 = vlaneseq
    %v328 = vshrl.u32 %v327, 7
    %v329 = vsub.s32 %v326, %v328
    %v330 = vrot.slane %v308, %v329
    %v332 = vunpack.c.l.s4 1966171168
    %v333 = vunpack.c.0.s8 %v332
    %v334 = vlaneseq
    %v335 = vshrl.u32 %v334, 7
    %v336 = vsub.s32 %v333, %v335
    %v337 = vrot.slane %v309, %v336
    %v338 = vcombine.high %v316, %v316
    %v339 = vcombine.high %v323, %v323
    %v340 = vcombine.high %v330, %v330
    %v341 = vcombine.high %v337, %v337
    %v342 = vlaneseq
    %v343 = vshrl.u32 %v342, 7
    %v344 = vsub.s32 0, %v343
    %v345 = vrot.slane %v267, %v344
    %v346 = vlaneseq
    %v347 = vshrl.u32 %v346, 7
    %v348 = vsub.s32 0, %v347
    %v349 = vrot.slane %v281, %v348
    %v350 = vlaneseq
    %v351 = vshrl.u32 %v350, 7
    %v352 = vsub.s32 0, %v351
    %v353 = vrot.slane %v289, %v352
    %v354 = vlaneseq
    %v355 = vshrl.u32 %v354, 7
    %v356 = vsub.s32 0, %v355
    %v357 = vrot.slane %v291, %v356
    %v358 = vlaneseq
    %v359 = vshrl.u32 %v358, 7
    %v360 = vsub.s32 0, %v359
    %v361 = vrot.slane %v274, %v360
    %v362 = vlaneseq
    %v363 = vshrl.u32 %v362, 7
    %v364 = vsub.s32 0, %v363
    %v365 = vrot.slane %v288, %v364
    %v366 = vlaneseq
    %v367 = vshrl.u32 %v366, 7
    %v368 = vsub.s32 0, %v367
    %v369 = vrot.slane %v290, %v368
    %v370 = vlaneseq
    %v371 = vshrl.u32 %v370, 7
    %v372 = vsub.s32 0, %v371
    %v373 = vrot.slane %v292, %v372
    %v374 = vlaneseq
    %v375 = vshrl.u32 %v374, 7
    %v376 = vsub.s32 0, %v375
    %v377 = vrot.slane %v316, %v376
    %v378 = vlaneseq
    %v379 = vshrl.u32 %v378, 7
    %v380 = vsub.s32 0, %v379
    %v381 = vrot.slane %v330, %v380
    %v382 = vlaneseq
    %v383 = vshrl.u32 %v382, 7
    %v384 = vsub.s32 0, %v383
    %v385 = vrot.slane %v338, %v384
    %v386 = vlaneseq
    %v387 = vshrl.u32 %v386, 7
    %v388 = vsub.s32 0, %v387
    %v389 = vrot.slane %v340, %v388
    %v390 = vlaneseq
    %v391 = vshrl.u32 %v390, 7
    %v392 = vsub.s32 0, %v391
    %v393 = vrot.slane %v323, %v392
    %v394 = vlaneseq
    %v395 = vshrl.u32 %v394, 7
    %v396 = vsub.s32 0, %v395
    %v397 = vrot.slane %v337, %v396
    %v398 = vlaneseq
    %v399 = vshrl.u32 %v398, 7
    %v400 = vsub.s32 0, %v399
    %v401 = vrot.slane %v339, %v400
    %v402 = vlaneseq
    %v403 = vshrl.u32 %v402, 7
    %v404 = vsub.s32 0, %v403
    %v405 = vrot.slane %v341, %v404
    %v422 = vmul.f32 %v72, %v345
    %v423 = vmul.f32 %v76, %v345
    %v424 = vmul.f32 %v83, %v349
    %v425 = vmul.f32 %v87, %v349
    %v426 = vmul.f32 %v94, %v353
    %v427 = vmul.f32 %v98, %v353
    %v428 = vmul.f32 %v105, %v357
    %v429 = vmul.f32 %v109, %v357
    %v430 = vmul.f32 %v116, %v361
    %v431 = vmul.f32 %v120, %v361
    %v432 = vmul.f32 %v127, %v365
    %v433 = vmul.f32 %v131, %v365
    %v434 = vmul.f32 %v138, %v369
    %v435 = vmul.f32 %v142, %v369
    %v436 = vmul.f32 %v149, %v373
    %v437 = vmul.f32 %v153, %v373
    %v438 = vmul.f32 %v160, %v377
    %v439 = vmul.f32 %v164, %v377
    %v440 = vmul.f32 %v171, %v381
    %v441 = vmul.f32 %v175, %v381
    %v442 = vmul.f32 %v182, %v385
    %v443 = vmul.f32 %v186, %v385
    %v444 = vmul.f32 %v193, %v389
    %v445 = vmul.f32 %v197, %v389
    %v446 = vmul.f32 %v204, %v393
    %v447 = vmul.f32 %v208, %v393
    %v448 = vmul.f32 %v215, %v397
    %v449 = vmul.f32 %v219, %v397
    %v450 = vmul.f32 %v226, %v401
    %v451 = vmul.f32 %v230, %v401
    %v452 = vmul.f32 %v237, %v405
    %v453 = vmul.f32 %v241, %v405
    %v455 = vlaneseq
    %v456 = vshrl.u32 %v455, 7
    %v457 = vsub.s32 0, %v456
    %v458 = vrot.slane %v61, %v457
    %v460 = vadd.f32 %v422, %v458
    %v461 = vadd.f32 %v423, %v458
    %v462 = vadd.f32 %v424, %v458
    %v463 = vadd.f32 %v425, %v458
    %v464 = vadd.f32 %v426, %v458
    %v465 = vadd.f32 %v427, %v458
    %v466 = vadd.f32 %v428, %v458
    %v467 = vadd.f32 %v429, %v458
    %v468 = vadd.f32 %v430, %v458
    %v469 = vadd.f32 %v431, %v458
    %v470 = vadd.f32 %v432, %v458
    %v471 = vadd.f32 %v433, %v458
    %v472 = vadd.f32 %v434, %v458
    %v473 = vadd.f32 %v435, %v458
    %v474 = vadd.f32 %v436, %v458
    %v475 = vadd.f32 %v437, %v458
    %v476 = vadd.f32 %v438, %v458
    %v477 = vadd.f32 %v439, %v458
    %v478 = vadd.f32 %v440, %v458
    %v479 = vadd.f32 %v441, %v458
    %v480 = vadd.f32 %v442, %v458
    %v481 = vadd.f32 %v443, %v458
    %v482 = vadd.f32 %v444, %v458
    %v483 = vadd.f32 %v445, %v458
    %v484 = vadd.f32 %v446, %v458
    %v485 = vadd.f32 %v447, %v458
    %v486 = vadd.f32 %v448, %v458
    %v487 = vadd.f32 %v449, %v458
    %v488 = vadd.f32 %v450, %v458
    %v489 = vadd.f32 %v451, %v458
    %v490 = vadd.f32 %v452, %v458
    %v491 = vadd.f32 %v453, %v458
    %vm492 = vcmp.ge.f32.partialorder %v460, 0.0
    %vm493 = vcmp.ge.f32.partialorder %v461, 0.0
    %vm494 = vcmp.ge.f32.partialorder %v462, 0.0
    %vm495 = vcmp.ge.f32.partialorder %v463, 0.0
    %vm496 = vcmp.ge.f32.partialorder %v464, 0.0
    %vm497 = vcmp.ge.f32.partialorder %v465, 0.0
    %vm498 = vcmp.ge.f32.partialorder %v466, 0.0
    %vm499 = vcmp.ge.f32.partialorder %v467, 0.0
    %vm500 = vcmp.ge.f32.partialorder %v468, 0.0
    %vm501 = vcmp.ge.f32.partialorder %v469, 0.0
    %vm502 = vcmp.ge.f32.partialorder %v470, 0.0
    %vm503 = vcmp.ge.f32.partialorder %v471, 0.0
    %vm504 = vcmp.ge.f32.partialorder %v472, 0.0
    %vm505 = vcmp.ge.f32.partialorder %v473, 0.0
    %vm506 = vcmp.ge.f32.partialorder %v474, 0.0
    %vm507 = vcmp.ge.f32.partialorder %v475, 0.0
    %vm508 = vcmp.ge.f32.partialorder %v476, 0.0
    %vm509 = vcmp.ge.f32.partialorder %v477, 0.0
    %vm510 = vcmp.ge.f32.partialorder %v478, 0.0
    %vm511 = vcmp.ge.f32.partialorder %v479, 0.0
    %vm512 = vcmp.ge.f32.partialorder %v480, 0.0
    %vm513 = vcmp.ge.f32.partialorder %v481, 0.0
    %vm514 = vcmp.ge.f32.partialorder %v482, 0.0
    %vm515 = vcmp.ge.f32.partialorder %v483, 0.0
    %vm516 = vcmp.ge.f32.partialorder %v484, 0.0
    %vm517 = vcmp.ge.f32.partialorder %v485, 0.0
    %vm518 = vcmp.ge.f32.partialorder %v486, 0.0
    %vm519 = vcmp.ge.f32.partialorder %v487, 0.0
    %vm520 = vcmp.ge.f32.partialorder %v488, 0.0
    %vm521 = vcmp.ge.f32.partialorder %v489, 0.0
    %vm522 = vcmp.ge.f32.partialorder %v490, 0.0
    %vm523 = vcmp.ge.f32.partialorder %v491, 0.0
    %v524 = vmul.f32 %v460, 0.01
    %v525 = vmul.f32 %v461, 0.01
    %v526 = vmul.f32 %v462, 0.01
    %v527 = vmul.f32 %v463, 0.01
    %v528 = vmul.f32 %v464, 0.01
    %v529 = vmul.f32 %v465, 0.01
    %v530 = vmul.f32 %v466, 0.01
    %v531 = vmul.f32 %v467, 0.01
    %v532 = vmul.f32 %v468, 0.01
    %v533 = vmul.f32 %v469, 0.01
    %v534 = vmul.f32 %v470, 0.01
    %v535 = vmul.f32 %v471, 0.01
    %v536 = vmul.f32 %v472, 0.01
    %v537 = vmul.f32 %v473, 0.01
    %v538 = vmul.f32 %v474, 0.01
    %v539 = vmul.f32 %v475, 0.01
    %v540 = vmul.f32 %v476, 0.01
    %v541 = vmul.f32 %v477, 0.01
    %v542 = vmul.f32 %v478, 0.01
    %v543 = vmul.f32 %v479, 0.01
    %v544 = vmul.f32 %v480, 0.01
    %v545 = vmul.f32 %v481, 0.01
    %v546 = vmul.f32 %v482, 0.01
    %v547 = vmul.f32 %v483, 0.01
    %v548 = vmul.f32 %v484, 0.01
    %v549 = vmul.f32 %v485, 0.01
    %v550 = vmul.f32 %v486, 0.01
    %v551 = vmul.f32 %v487, 0.01
    %v552 = vmul.f32 %v488, 0.01
    %v553 = vmul.f32 %v489, 0.01
    %v554 = vmul.f32 %v490, 0.01
    %v555 = vmul.f32 %v491, 0.01
    %v556 = vsel %vm492, %v460, %v524
    %v557 = vsel %vm493, %v461, %v525
    %v558 = vsel %vm494, %v462, %v526
    %v559 = vsel %vm495, %v463, %v527
    %v560 = vsel %vm496, %v464, %v528
    %v561 = vsel %vm497, %v465, %v529
    %v562 = vsel %vm498, %v466, %v530
    %v563 = vsel %vm499, %v467, %v531
    %v564 = vsel %vm500, %v468, %v532
    %v565 = vsel %vm501, %v469, %v533
    %v566 = vsel %vm502, %v470, %v534
    %v567 = vsel %vm503, %v471, %v535
    %v568 = vsel %vm504, %v472, %v536
    %v569 = vsel %vm505, %v473, %v537
    %v570 = vsel %vm506, %v474, %v538
    %v571 = vsel %vm507, %v475, %v539
    %v572 = vsel %vm508, %v476, %v540
    %v573 = vsel %vm509, %v477, %v541
    %v574 = vsel %vm510, %v478, %v542
    %v575 = vsel %vm511, %v479, %v543
    %v576 = vsel %vm512, %v480, %v544
    %v577 = vsel %vm513, %v481, %v545
    %v578 = vsel %vm514, %v482, %v546
    %v579 = vsel %vm515, %v483, %v547
    %v580 = vsel %vm516, %v484, %v548
    %v581 = vsel %vm517, %v485, %v549
    %v582 = vsel %vm518, %v486, %v550
    %v583 = vsel %vm519, %v487, %v551
    %v584 = vsel %vm520, %v488, %v552
    %v585 = vsel %vm521, %v489, %v553
    %v586 = vsel %vm522, %v490, %v554
    %v587 = vsel %vm523, %v491, %v555
    %vm588 = vcmask 130048
    %v589 = vsel %vm588, %v556, -inf
    %590 = vmax.xlane.f32.xlu0 %v589
    %v591 = vpop.xlane.xlu0 %590
    %v592 = vsel %vm588, %v557, -inf
    %593 = vmax.xlane.f32.xlu0 %v592
    %v594 = vpop.xlane.xlu0 %593
    %v595 = vsel %vm588, %v558, -inf
    %596 = vmax.xlane.f32.xlu0 %v595
    %v597 = vpop.xlane.xlu0 %596
    %v598 = vsel %vm588, %v559, -inf
    %599 = vmax.xlane.f32.xlu0 %v598
    %v600 = vpop.xlane.xlu0 %599
    %v601 = vsel %vm588, %v560, -inf
    %602 = vmax.xlane.f32.xlu0 %v601
    %v603 = vpop.xlane.xlu0 %602
    %v604 = vsel %vm588, %v561, -inf
    %605 = vmax.xlane.f32.xlu0 %v604
    %v606 = vpop.xlane.xlu0 %605
    %v607 = vsel %vm588, %v562, -inf
    %608 = vmax.xlane.f32.xlu0 %v607
    %v609 = vpop.xlane.xlu0 %608
    %v610 = vsel %vm588, %v563, -inf
    %611 = vmax.xlane.f32.xlu0 %v610
    %v612 = vpop.xlane.xlu0 %611
    %v613 = vsel %vm588, %v564, -inf
    %614 = vmax.xlane.f32.xlu0 %v613
    %v615 = vpop.xlane.xlu0 %614
    %v616 = vsel %vm588, %v565, -inf
    %617 = vmax.xlane.f32.xlu0 %v616
    %v618 = vpop.xlane.xlu0 %617
    %v619 = vsel %vm588, %v566, -inf
    %620 = vmax.xlane.f32.xlu0 %v619
    %v621 = vpop.xlane.xlu0 %620
    %v622 = vsel %vm588, %v567, -inf
    %623 = vmax.xlane.f32.xlu0 %v622
    %v624 = vpop.xlane.xlu0 %623
    %v625 = vsel %vm588, %v568, -inf
    %626 = vmax.xlane.f32.xlu0 %v625
    %v627 = vpop.xlane.xlu0 %626
    %v628 = vsel %vm588, %v569, -inf
    %629 = vmax.xlane.f32.xlu0 %v628
    %v630 = vpop.xlane.xlu0 %629
    %v631 = vsel %vm588, %v570, -inf
    %632 = vmax.xlane.f32.xlu0 %v631
    %v633 = vpop.xlane.xlu0 %632
    %v634 = vsel %vm588, %v571, -inf
    %635 = vmax.xlane.f32.xlu0 %v634
    %v636 = vpop.xlane.xlu0 %635
    %v637 = vsel %vm588, %v572, -inf
    %638 = vmax.xlane.f32.xlu0 %v637
    %v639 = vpop.xlane.xlu0 %638
    %v640 = vsel %vm588, %v573, -inf
    %641 = vmax.xlane.f32.xlu0 %v640
    %v642 = vpop.xlane.xlu0 %641
    %v643 = vsel %vm588, %v574, -inf
    %644 = vmax.xlane.f32.xlu0 %v643
    %v645 = vpop.xlane.xlu0 %644
    %v646 = vsel %vm588, %v575, -inf
    %647 = vmax.xlane.f32.xlu0 %v646
    %v648 = vpop.xlane.xlu0 %647
    %v649 = vsel %vm588, %v576, -inf
    %650 = vmax.xlane.f32.xlu0 %v649
    %v651 = vpop.xlane.xlu0 %650
    %v652 = vsel %vm588, %v577, -inf
    %653 = vmax.xlane.f32.xlu0 %v652
    %v654 = vpop.xlane.xlu0 %653
    %v655 = vsel %vm588, %v578, -inf
    %656 = vmax.xlane.f32.xlu0 %v655
    %v657 = vpop.xlane.xlu0 %656
    %v658 = vsel %vm588, %v579, -inf
    %659 = vmax.xlane.f32.xlu0 %v658
    %v660 = vpop.xlane.xlu0 %659
    %v661 = vsel %vm588, %v580, -inf
    %662 = vmax.xlane.f32.xlu0 %v661
    %v663 = vpop.xlane.xlu0 %662
    %v664 = vsel %vm588, %v581, -inf
    %665 = vmax.xlane.f32.xlu0 %v664
    %v666 = vpop.xlane.xlu0 %665
    %v667 = vsel %vm588, %v582, -inf
    %668 = vmax.xlane.f32.xlu0 %v667
    %v669 = vpop.xlane.xlu0 %668
    %v670 = vsel %vm588, %v583, -inf
    %671 = vmax.xlane.f32.xlu0 %v670
    %v672 = vpop.xlane.xlu0 %671
    %v673 = vsel %vm588, %v584, -inf
    %674 = vmax.xlane.f32.xlu0 %v673
    %v675 = vpop.xlane.xlu0 %674
    %v676 = vsel %vm588, %v585, -inf
    %677 = vmax.xlane.f32.xlu0 %v676
    %v678 = vpop.xlane.xlu0 %677
    %v679 = vsel %vm588, %v586, -inf
    %680 = vmax.xlane.f32.xlu0 %v679
    %v681 = vpop.xlane.xlu0 %680
    %v682 = vsel %vm588, %v587, -inf
    %683 = vmax.xlane.f32.xlu0 %v682
    %v684 = vpop.xlane.xlu0 %683
    %v685 = vsub.f32 %v556, %v591
    %v686 = vsub.f32 %v557, %v594
    %v687 = vsub.f32 %v558, %v597
    %v688 = vsub.f32 %v559, %v600
    %v689 = vsub.f32 %v560, %v603
    %v690 = vsub.f32 %v561, %v606
    %v691 = vsub.f32 %v562, %v609
    %v692 = vsub.f32 %v563, %v612
    %v693 = vsub.f32 %v564, %v615
    %v694 = vsub.f32 %v565, %v618
    %v695 = vsub.f32 %v566, %v621
    %v696 = vsub.f32 %v567, %v624
    %v697 = vsub.f32 %v568, %v627
    %v698 = vsub.f32 %v569, %v630
    %v699 = vsub.f32 %v570, %v633
    %v700 = vsub.f32 %v571, %v636
    %v701 = vsub.f32 %v572, %v639
    %v702 = vsub.f32 %v573, %v642
    %v703 = vsub.f32 %v574, %v645
    %v704 = vsub.f32 %v575, %v648
    %v705 = vsub.f32 %v576, %v651
    %v706 = vsub.f32 %v577, %v654
    %v707 = vsub.f32 %v578, %v657
    %v708 = vsub.f32 %v579, %v660
    %v709 = vsub.f32 %v580, %v663
    %v710 = vsub.f32 %v581, %v666
    %v711 = vsub.f32 %v582, %v669
    %v712 = vsub.f32 %v583, %v672
    %v713 = vsub.f32 %v584, %v675
    %v714 = vsub.f32 %v585, %v678
    %v715 = vsub.f32 %v586, %v681
    %v716 = vsub.f32 %v587, %v684
    %v717 = vmul.f32 %v685, 1.442695
    %v718 = vpow.pop %v717
    %v719 = vmul.f32 %v686, 1.442695
    %v720 = vpow.pop %v719
    %v721 = vmul.f32 %v687, 1.442695
    %v722 = vpow.pop %v721
    %v723 = vmul.f32 %v688, 1.442695
    %v724 = vpow.pop %v723
    %v725 = vmul.f32 %v689, 1.442695
    %v726 = vpow.pop %v725
    %v727 = vmul.f32 %v690, 1.442695
    %v728 = vpow.pop %v727
    %v729 = vmul.f32 %v691, 1.442695
    %v730 = vpow.pop %v729
    %v731 = vmul.f32 %v692, 1.442695
    %v732 = vpow.pop %v731
    %v733 = vmul.f32 %v693, 1.442695
    %v734 = vpow.pop %v733
    %v735 = vmul.f32 %v694, 1.442695
    %v736 = vpow.pop %v735
    %v737 = vmul.f32 %v695, 1.442695
    %v738 = vpow.pop %v737
    %v739 = vmul.f32 %v696, 1.442695
    %v740 = vpow.pop %v739
    %v741 = vmul.f32 %v697, 1.442695
    %v742 = vpow.pop %v741
    %v743 = vmul.f32 %v698, 1.442695
    %v744 = vpow.pop %v743
    %v745 = vmul.f32 %v699, 1.442695
    %v746 = vpow.pop %v745
    %v747 = vmul.f32 %v700, 1.442695
    %v748 = vpow.pop %v747
    %v749 = vmul.f32 %v701, 1.442695
    %v750 = vpow.pop %v749
    %v751 = vmul.f32 %v702, 1.442695
    %v752 = vpow.pop %v751
    %v753 = vmul.f32 %v703, 1.442695
    %v754 = vpow.pop %v753
    %v755 = vmul.f32 %v704, 1.442695
    %v756 = vpow.pop %v755
    %v757 = vmul.f32 %v705, 1.442695
    %v758 = vpow.pop %v757
    %v759 = vmul.f32 %v706, 1.442695
    %v760 = vpow.pop %v759
    %v761 = vmul.f32 %v707, 1.442695
    %v762 = vpow.pop %v761
    %v763 = vmul.f32 %v708, 1.442695
    %v764 = vpow.pop %v763
    %v765 = vmul.f32 %v709, 1.442695
    %v766 = vpow.pop %v765
    %v767 = vmul.f32 %v710, 1.442695
    %v768 = vpow.pop %v767
    %v769 = vmul.f32 %v711, 1.442695
    %v770 = vpow.pop %v769
    %v771 = vmul.f32 %v712, 1.442695
    %v772 = vpow.pop %v771
    %v773 = vmul.f32 %v713, 1.442695
    %v774 = vpow.pop %v773
    %v775 = vmul.f32 %v714, 1.442695
    %v776 = vpow.pop %v775
    %v777 = vmul.f32 %v715, 1.442695
    %v778 = vpow.pop %v777
    %v779 = vmul.f32 %v716, 1.442695
    %v780 = vpow.pop %v779
    %v781 = vsel %vm588, %v718, 0.0
    %782 = vadd.xlane.f32.xlu0 %v781
    %v783 = vpop.xlane.xlu0 %782
    %v784 = vsel %vm588, %v720, 0.0
    %785 = vadd.xlane.f32.xlu0 %v784
    %v786 = vpop.xlane.xlu0 %785
    %v787 = vsel %vm588, %v722, 0.0
    %788 = vadd.xlane.f32.xlu0 %v787
    %v789 = vpop.xlane.xlu0 %788
    %v790 = vsel %vm588, %v724, 0.0
    %791 = vadd.xlane.f32.xlu0 %v790
    %v792 = vpop.xlane.xlu0 %791
    %v793 = vsel %vm588, %v726, 0.0
    %794 = vadd.xlane.f32.xlu0 %v793
    %v795 = vpop.xlane.xlu0 %794
    %v796 = vsel %vm588, %v728, 0.0
    %797 = vadd.xlane.f32.xlu0 %v796
    %v798 = vpop.xlane.xlu0 %797
    %v799 = vsel %vm588, %v730, 0.0
    %800 = vadd.xlane.f32.xlu0 %v799
    %v801 = vpop.xlane.xlu0 %800
    %v802 = vsel %vm588, %v732, 0.0
    %803 = vadd.xlane.f32.xlu0 %v802
    %v804 = vpop.xlane.xlu0 %803
    %v805 = vsel %vm588, %v734, 0.0
    %806 = vadd.xlane.f32.xlu0 %v805
    %v807 = vpop.xlane.xlu0 %806
    %v808 = vsel %vm588, %v736, 0.0
    %809 = vadd.xlane.f32.xlu0 %v808
    %v810 = vpop.xlane.xlu0 %809
    %v811 = vsel %vm588, %v738, 0.0
    %812 = vadd.xlane.f32.xlu0 %v811
    %v813 = vpop.xlane.xlu0 %812
    %v814 = vsel %vm588, %v740, 0.0
    %815 = vadd.xlane.f32.xlu0 %v814
    %v816 = vpop.xlane.xlu0 %815
    %v817 = vsel %vm588, %v742, 0.0
    %818 = vadd.xlane.f32.xlu0 %v817
    %v819 = vpop.xlane.xlu0 %818
    %v820 = vsel %vm588, %v744, 0.0
    %821 = vadd.xlane.f32.xlu0 %v820
    %v822 = vpop.xlane.xlu0 %821
    %v823 = vsel %vm588, %v746, 0.0
    %824 = vadd.xlane.f32.xlu0 %v823
    %v825 = vpop.xlane.xlu0 %824
    %v826 = vsel %vm588, %v748, 0.0
    %827 = vadd.xlane.f32.xlu0 %v826
    %v828 = vpop.xlane.xlu0 %827
    %v829 = vsel %vm588, %v750, 0.0
    %830 = vadd.xlane.f32.xlu0 %v829
    %v831 = vpop.xlane.xlu0 %830
    %v832 = vsel %vm588, %v752, 0.0
    %833 = vadd.xlane.f32.xlu0 %v832
    %v834 = vpop.xlane.xlu0 %833
    %v835 = vsel %vm588, %v754, 0.0
    %836 = vadd.xlane.f32.xlu0 %v835
    %v837 = vpop.xlane.xlu0 %836
    %v838 = vsel %vm588, %v756, 0.0
    %839 = vadd.xlane.f32.xlu0 %v838
    %v840 = vpop.xlane.xlu0 %839
    %v841 = vsel %vm588, %v758, 0.0
    %842 = vadd.xlane.f32.xlu0 %v841
    %v843 = vpop.xlane.xlu0 %842
    %v844 = vsel %vm588, %v760, 0.0
    %845 = vadd.xlane.f32.xlu0 %v844
    %v846 = vpop.xlane.xlu0 %845
    %v847 = vsel %vm588, %v762, 0.0
    %848 = vadd.xlane.f32.xlu0 %v847
    %v849 = vpop.xlane.xlu0 %848
    %v850 = vsel %vm588, %v764, 0.0
    %851 = vadd.xlane.f32.xlu0 %v850
    %v852 = vpop.xlane.xlu0 %851
    %v853 = vsel %vm588, %v766, 0.0
    %854 = vadd.xlane.f32.xlu0 %v853
    %v855 = vpop.xlane.xlu0 %854
    %v856 = vsel %vm588, %v768, 0.0
    %857 = vadd.xlane.f32.xlu0 %v856
    %v858 = vpop.xlane.xlu0 %857
    %v859 = vsel %vm588, %v770, 0.0
    %860 = vadd.xlane.f32.xlu0 %v859
    %v861 = vpop.xlane.xlu0 %860
    %v862 = vsel %vm588, %v772, 0.0
    %863 = vadd.xlane.f32.xlu0 %v862
    %v864 = vpop.xlane.xlu0 %863
    %v865 = vsel %vm588, %v774, 0.0
    %866 = vadd.xlane.f32.xlu0 %v865
    %v867 = vpop.xlane.xlu0 %866
    %v868 = vsel %vm588, %v776, 0.0
    %869 = vadd.xlane.f32.xlu0 %v868
    %v870 = vpop.xlane.xlu0 %869
    %v871 = vsel %vm588, %v778, 0.0
    %872 = vadd.xlane.f32.xlu0 %v871
    %v873 = vpop.xlane.xlu0 %872
    %v874 = vsel %vm588, %v780, 0.0
    %875 = vadd.xlane.f32.xlu0 %v874
    %v876 = vpop.xlane.xlu0 %875
    %v909 = vlaneseq
    %v910 = vand.u32 %v909, 127
    %v911 = vlaneseq
    %v912 = vshrl.u32 %v911, 7
    %v913 = vsub.s32 %v910, %v912
    %v914 = vrot.slane %v783, %v913
    %v915 = vadd.s32 %v910, 4294967288
    %v916 = vlaneseq
    %v917 = vshrl.u32 %v916, 7
    %v918 = vsub.s32 %v915, %v917
    %v919 = vrot.slane %v786, %v918
    %vm920 = vcmask 130112
    %v921 = vsel %vm920, %v919, %v914
    %v922 = vlaneseq
    %v923 = vshrl.u32 %v922, 7
    %v924 = vsub.s32 %v910, %v923
    %v925 = vrot.slane %v789, %v924
    %v926 = vlaneseq
    %v927 = vshrl.u32 %v926, 7
    %v928 = vsub.s32 %v915, %v927
    %v929 = vrot.slane %v792, %v928
    %v930 = vsel %vm920, %v929, %v925
    %v931 = vlaneseq
    %v932 = vshrl.u32 %v931, 7
    %v933 = vsub.s32 %v910, %v932
    %v934 = vrot.slane %v795, %v933
    %v935 = vlaneseq
    %v936 = vshrl.u32 %v935, 7
    %v937 = vsub.s32 %v915, %v936
    %v938 = vrot.slane %v798, %v937
    %v939 = vsel %vm920, %v938, %v934
    %v940 = vlaneseq
    %v941 = vshrl.u32 %v940, 7
    %v942 = vsub.s32 %v910, %v941
    %v943 = vrot.slane %v801, %v942
    %v944 = vlaneseq
    %v945 = vshrl.u32 %v944, 7
    %v946 = vsub.s32 %v915, %v945
    %v947 = vrot.slane %v804, %v946
    %v948 = vsel %vm920, %v947, %v943
    %v949 = vlaneseq
    %v950 = vshrl.u32 %v949, 7
    %v951 = vsub.s32 %v910, %v950
    %v952 = vrot.slane %v807, %v951
    %v953 = vlaneseq
    %v954 = vshrl.u32 %v953, 7
    %v955 = vsub.s32 %v915, %v954
    %v956 = vrot.slane %v810, %v955
    %v957 = vsel %vm920, %v956, %v952
    %v958 = vlaneseq
    %v959 = vshrl.u32 %v958, 7
    %v960 = vsub.s32 %v910, %v959
    %v961 = vrot.slane %v813, %v960
    %v962 = vlaneseq
    %v963 = vshrl.u32 %v962, 7
    %v964 = vsub.s32 %v915, %v963
    %v965 = vrot.slane %v816, %v964
    %v966 = vsel %vm920, %v965, %v961
    %v967 = vlaneseq
    %v968 = vshrl.u32 %v967, 7
    %v969 = vsub.s32 %v910, %v968
    %v970 = vrot.slane %v819, %v969
    %v971 = vlaneseq
    %v972 = vshrl.u32 %v971, 7
    %v973 = vsub.s32 %v915, %v972
    %v974 = vrot.slane %v822, %v973
    %v975 = vsel %vm920, %v974, %v970
    %v976 = vlaneseq
    %v977 = vshrl.u32 %v976, 7
    %v978 = vsub.s32 %v910, %v977
    %v979 = vrot.slane %v825, %v978
    %v980 = vlaneseq
    %v981 = vshrl.u32 %v980, 7
    %v982 = vsub.s32 %v915, %v981
    %v983 = vrot.slane %v828, %v982
    %v984 = vsel %vm920, %v983, %v979
    %v985 = vlaneseq
    %v986 = vshrl.u32 %v985, 7
    %v987 = vsub.s32 %v910, %v986
    %v988 = vrot.slane %v831, %v987
    %v989 = vlaneseq
    %v990 = vshrl.u32 %v989, 7
    %v991 = vsub.s32 %v915, %v990
    %v992 = vrot.slane %v834, %v991
    %v993 = vsel %vm920, %v992, %v988
    %v994 = vlaneseq
    %v995 = vshrl.u32 %v994, 7
    %v996 = vsub.s32 %v910, %v995
    %v997 = vrot.slane %v837, %v996
    %v998 = vlaneseq
    %v999 = vshrl.u32 %v998, 7
    %v1000 = vsub.s32 %v915, %v999
    %v1001 = vrot.slane %v840, %v1000
    %v1002 = vsel %vm920, %v1001, %v997
    %v1003 = vlaneseq
    %v1004 = vshrl.u32 %v1003, 7
    %v1005 = vsub.s32 %v910, %v1004
    %v1006 = vrot.slane %v843, %v1005
    %v1007 = vlaneseq
    %v1008 = vshrl.u32 %v1007, 7
    %v1009 = vsub.s32 %v915, %v1008
    %v1010 = vrot.slane %v846, %v1009
    %v1011 = vsel %vm920, %v1010, %v1006
    %v1012 = vlaneseq
    %v1013 = vshrl.u32 %v1012, 7
    %v1014 = vsub.s32 %v910, %v1013
    %v1015 = vrot.slane %v849, %v1014
    %v1016 = vlaneseq
    %v1017 = vshrl.u32 %v1016, 7
    %v1018 = vsub.s32 %v915, %v1017
    %v1019 = vrot.slane %v852, %v1018
    %v1020 = vsel %vm920, %v1019, %v1015
    %v1021 = vlaneseq
    %v1022 = vshrl.u32 %v1021, 7
    %v1023 = vsub.s32 %v910, %v1022
    %v1024 = vrot.slane %v855, %v1023
    %v1025 = vlaneseq
    %v1026 = vshrl.u32 %v1025, 7
    %v1027 = vsub.s32 %v915, %v1026
    %v1028 = vrot.slane %v858, %v1027
    %v1029 = vsel %vm920, %v1028, %v1024
    %v1030 = vlaneseq
    %v1031 = vshrl.u32 %v1030, 7
    %v1032 = vsub.s32 %v910, %v1031
    %v1033 = vrot.slane %v861, %v1032
    %v1034 = vlaneseq
    %v1035 = vshrl.u32 %v1034, 7
    %v1036 = vsub.s32 %v915, %v1035
    %v1037 = vrot.slane %v864, %v1036
    %v1038 = vsel %vm920, %v1037, %v1033
    %v1039 = vlaneseq
    %v1040 = vshrl.u32 %v1039, 7
    %v1041 = vsub.s32 %v910, %v1040
    %v1042 = vrot.slane %v867, %v1041
    %v1043 = vlaneseq
    %v1044 = vshrl.u32 %v1043, 7
    %v1045 = vsub.s32 %v915, %v1044
    %v1046 = vrot.slane %v870, %v1045
    %v1047 = vsel %vm920, %v1046, %v1042
    %v1048 = vlaneseq
    %v1049 = vshrl.u32 %v1048, 7
    %v1050 = vsub.s32 %v910, %v1049
    %v1051 = vrot.slane %v873, %v1050
    %v1052 = vlaneseq
    %v1053 = vshrl.u32 %v1052, 7
    %v1054 = vsub.s32 %v915, %v1053
    %v1055 = vrot.slane %v876, %v1054
    %v1056 = vsel %vm920, %v1055, %v1051
    %vm1057 = vcmask 1041409
    %v1058 = vsel %vm1057, %v930, %v921
    %vm1059 = vcmask 1042434
    %v1060 = vsel %vm1059, %v939, %v1058
    %vm1061 = vcmask 1043459
    %v1062 = vsel %vm1061, %v948, %v1060
    %vm1063 = vcmask 1044484
    %v1064 = vsel %vm1063, %v957, %v1062
    %vm1065 = vcmask 1045509
    %v1066 = vsel %vm1065, %v966, %v1064
    %vm1067 = vcmask 1046534
    %v1068 = vsel %vm1067, %v975, %v1066
    %vm1069 = vcmask 1047559
    %v1070 = vsel %vm1069, %v984, %v1068
    %v1071 = vsel %vm1057, %v1002, %v993
    %v1072 = vsel %vm1059, %v1011, %v1071
    %v1073 = vsel %vm1061, %v1020, %v1072
    %v1074 = vsel %vm1063, %v1029, %v1073
    %v1075 = vsel %vm1065, %v1038, %v1074
    %v1076 = vsel %vm1067, %v1047, %v1075
    %v1077 = vsel %vm1069, %v1056, %v1076
    %v1080 = vrcp.pop %v1070
    %v1081 = vmul.f32 %v62, %v1080
    %v1082 = vrcp.pop %v1077
    %v1083 = vmul.f32 %v63, %v1082
    %v1084 = vmul.f32 %v718, %v64
    %v1085 = vmul.f32 %v720, %v65
    %v1086 = vmul.f32 %v722, %v64
    %v1087 = vmul.f32 %v724, %v65
    %v1088 = vmul.f32 %v726, %v64
    %v1089 = vmul.f32 %v728, %v65
    %v1090 = vmul.f32 %v730, %v64
    %v1091 = vmul.f32 %v732, %v65
    %v1092 = vmul.f32 %v734, %v64
    %v1093 = vmul.f32 %v736, %v65
    %v1094 = vmul.f32 %v738, %v64
    %v1095 = vmul.f32 %v740, %v65
    %v1096 = vmul.f32 %v742, %v64
    %v1097 = vmul.f32 %v744, %v65
    %v1098 = vmul.f32 %v746, %v64
    %v1099 = vmul.f32 %v748, %v65
    %v1100 = vmul.f32 %v750, %v64
    %v1101 = vmul.f32 %v752, %v65
    %v1102 = vmul.f32 %v754, %v64
    %v1103 = vmul.f32 %v756, %v65
    %v1104 = vmul.f32 %v758, %v64
    %v1105 = vmul.f32 %v760, %v65
    %v1106 = vmul.f32 %v762, %v64
    %v1107 = vmul.f32 %v764, %v65
    %v1108 = vmul.f32 %v766, %v64
    %v1109 = vmul.f32 %v768, %v65
    %v1110 = vmul.f32 %v770, %v64
    %v1111 = vmul.f32 %v772, %v65
    %v1112 = vmul.f32 %v774, %v64
    %v1113 = vmul.f32 %v776, %v65
    %v1114 = vmul.f32 %v778, %v64
    %v1115 = vmul.f32 %v780, %v65
    %v1116 = vlaneseq
    %v1117 = vshrl.u32 %v1116, 7
    %v1118 = vsub.s32 0, %v1117
    %v1119 = vrot.slane %v1081, %v1118
    %1121 = vbcast.lane.b32.xlu0 %v1119, 256
    %v1122 = vpop.permute.xlu0 %1121
    %s1124 = sor.u32 256, 8
    %1125 = vbcast.lane.b32.xlu0 %v1119, %s1124
    %v1126 = vpop.permute.xlu0 %1125
    %v1127 = vlaneseq
    %v1128 = vshrl.u32 %v1127, 7
    %v1129 = vsub.s32 1, %v1128
    %v1130 = vrot.slane %v1081, %v1129
    %1132 = vbcast.lane.b32.xlu0 %v1130, 256
    %v1133 = vpop.permute.xlu0 %1132
    %s1135 = sor.u32 256, 8
    %1136 = vbcast.lane.b32.xlu0 %v1130, %s1135
    %v1137 = vpop.permute.xlu0 %1136
    %v1138 = vlaneseq
    %v1139 = vshrl.u32 %v1138, 7
    %v1140 = vsub.s32 2, %v1139
    %v1141 = vrot.slane %v1081, %v1140
    %1143 = vbcast.lane.b32.xlu0 %v1141, 256
    %v1144 = vpop.permute.xlu0 %1143
    %s1146 = sor.u32 256, 8
    %1147 = vbcast.lane.b32.xlu0 %v1141, %s1146
    %v1148 = vpop.permute.xlu0 %1147
    %v1149 = vlaneseq
    %v1150 = vshrl.u32 %v1149, 7
    %v1151 = vsub.s32 3, %v1150
    %v1152 = vrot.slane %v1081, %v1151
    %1154 = vbcast.lane.b32.xlu0 %v1152, 256
    %v1155 = vpop.permute.xlu0 %1154
    %s1157 = sor.u32 256, 8
    %1158 = vbcast.lane.b32.xlu0 %v1152, %s1157
    %v1159 = vpop.permute.xlu0 %1158
    %v1160 = vlaneseq
    %v1161 = vshrl.u32 %v1160, 7
    %v1162 = vsub.s32 4, %v1161
    %v1163 = vrot.slane %v1081, %v1162
    %1165 = vbcast.lane.b32.xlu0 %v1163, 256
    %v1166 = vpop.permute.xlu0 %1165
    %s1168 = sor.u32 256, 8
    %1169 = vbcast.lane.b32.xlu0 %v1163, %s1168
    %v1170 = vpop.permute.xlu0 %1169
    %v1171 = vlaneseq
    %v1172 = vshrl.u32 %v1171, 7
    %v1173 = vsub.s32 5, %v1172
    %v1174 = vrot.slane %v1081, %v1173
    %1176 = vbcast.lane.b32.xlu0 %v1174, 256
    %v1177 = vpop.permute.xlu0 %1176
    %s1179 = sor.u32 256, 8
    %1180 = vbcast.lane.b32.xlu0 %v1174, %s1179
    %v1181 = vpop.permute.xlu0 %1180
    %v1182 = vlaneseq
    %v1183 = vshrl.u32 %v1182, 7
    %v1184 = vsub.s32 6, %v1183
    %v1185 = vrot.slane %v1081, %v1184
    %1187 = vbcast.lane.b32.xlu0 %v1185, 256
    %v1188 = vpop.permute.xlu0 %1187
    %s1190 = sor.u32 256, 8
    %1191 = vbcast.lane.b32.xlu0 %v1185, %s1190
    %v1192 = vpop.permute.xlu0 %1191
    %v1193 = vlaneseq
    %v1194 = vshrl.u32 %v1193, 7
    %v1195 = vsub.s32 7, %v1194
    %v1196 = vrot.slane %v1081, %v1195
    %1198 = vbcast.lane.b32.xlu0 %v1196, 256
    %v1199 = vpop.permute.xlu0 %1198
    %s1201 = sor.u32 256, 8
    %1202 = vbcast.lane.b32.xlu0 %v1196, %s1201
    %v1203 = vpop.permute.xlu0 %1202
    %v1204 = vlaneseq
    %v1205 = vshrl.u32 %v1204, 7
    %v1206 = vsub.s32 0, %v1205
    %v1207 = vrot.slane %v1083, %v1206
    %1209 = vbcast.lane.b32.xlu0 %v1207, 256
    %v1210 = vpop.permute.xlu0 %1209
    %s1212 = sor.u32 256, 8
    %1213 = vbcast.lane.b32.xlu0 %v1207, %s1212
    %v1214 = vpop.permute.xlu0 %1213
    %v1215 = vlaneseq
    %v1216 = vshrl.u32 %v1215, 7
    %v1217 = vsub.s32 1, %v1216
    %v1218 = vrot.slane %v1083, %v1217
    %1220 = vbcast.lane.b32.xlu0 %v1218, 256
    %v1221 = vpop.permute.xlu0 %1220
    %s1223 = sor.u32 256, 8
    %1224 = vbcast.lane.b32.xlu0 %v1218, %s1223
    %v1225 = vpop.permute.xlu0 %1224
    %v1226 = vlaneseq
    %v1227 = vshrl.u32 %v1226, 7
    %v1228 = vsub.s32 2, %v1227
    %v1229 = vrot.slane %v1083, %v1228
    %1231 = vbcast.lane.b32.xlu0 %v1229, 256
    %v1232 = vpop.permute.xlu0 %1231
    %s1234 = sor.u32 256, 8
    %1235 = vbcast.lane.b32.xlu0 %v1229, %s1234
    %v1236 = vpop.permute.xlu0 %1235
    %v1237 = vlaneseq
    %v1238 = vshrl.u32 %v1237, 7
    %v1239 = vsub.s32 3, %v1238
    %v1240 = vrot.slane %v1083, %v1239
    %1242 = vbcast.lane.b32.xlu0 %v1240, 256
    %v1243 = vpop.permute.xlu0 %1242
    %s1245 = sor.u32 256, 8
    %1246 = vbcast.lane.b32.xlu0 %v1240, %s1245
    %v1247 = vpop.permute.xlu0 %1246
    %v1248 = vlaneseq
    %v1249 = vshrl.u32 %v1248, 7
    %v1250 = vsub.s32 4, %v1249
    %v1251 = vrot.slane %v1083, %v1250
    %1253 = vbcast.lane.b32.xlu0 %v1251, 256
    %v1254 = vpop.permute.xlu0 %1253
    %s1256 = sor.u32 256, 8
    %1257 = vbcast.lane.b32.xlu0 %v1251, %s1256
    %v1258 = vpop.permute.xlu0 %1257
    %v1259 = vlaneseq
    %v1260 = vshrl.u32 %v1259, 7
    %v1261 = vsub.s32 5, %v1260
    %v1262 = vrot.slane %v1083, %v1261
    %1264 = vbcast.lane.b32.xlu0 %v1262, 256
    %v1265 = vpop.permute.xlu0 %1264
    %s1267 = sor.u32 256, 8
    %1268 = vbcast.lane.b32.xlu0 %v1262, %s1267
    %v1269 = vpop.permute.xlu0 %1268
    %v1270 = vlaneseq
    %v1271 = vshrl.u32 %v1270, 7
    %v1272 = vsub.s32 6, %v1271
    %v1273 = vrot.slane %v1083, %v1272
    %1275 = vbcast.lane.b32.xlu0 %v1273, 256
    %v1276 = vpop.permute.xlu0 %1275
    %s1278 = sor.u32 256, 8
    %1279 = vbcast.lane.b32.xlu0 %v1273, %s1278
    %v1280 = vpop.permute.xlu0 %1279
    %v1281 = vlaneseq
    %v1282 = vshrl.u32 %v1281, 7
    %v1283 = vsub.s32 7, %v1282
    %v1284 = vrot.slane %v1083, %v1283
    %1286 = vbcast.lane.b32.xlu0 %v1284, 256
    %v1287 = vpop.permute.xlu0 %1286
    %s1289 = sor.u32 256, 8
    %1290 = vbcast.lane.b32.xlu0 %v1284, %s1289
    %v1291 = vpop.permute.xlu0 %1290
    %v1292 = vmul.f32 %v1122, %v1084
    %v1293 = vmul.f32 %v1126, %v1085
    %v1294 = vmul.f32 %v1133, %v1086
    %v1295 = vmul.f32 %v1137, %v1087
    %v1296 = vmul.f32 %v1144, %v1088
    %v1297 = vmul.f32 %v1148, %v1089
    %v1298 = vmul.f32 %v1155, %v1090
    %v1299 = vmul.f32 %v1159, %v1091
    %v1300 = vmul.f32 %v1166, %v1092
    %v1301 = vmul.f32 %v1170, %v1093
    %v1302 = vmul.f32 %v1177, %v1094
    %v1303 = vmul.f32 %v1181, %v1095
    %v1304 = vmul.f32 %v1188, %v1096
    %v1305 = vmul.f32 %v1192, %v1097
    %v1306 = vmul.f32 %v1199, %v1098
    %v1307 = vmul.f32 %v1203, %v1099
    %v1308 = vmul.f32 %v1210, %v1100
    %v1309 = vmul.f32 %v1214, %v1101
    %v1310 = vmul.f32 %v1221, %v1102
    %v1311 = vmul.f32 %v1225, %v1103
    %v1312 = vmul.f32 %v1232, %v1104
    %v1313 = vmul.f32 %v1236, %v1105
    %v1314 = vmul.f32 %v1243, %v1106
    %v1315 = vmul.f32 %v1247, %v1107
    %v1316 = vmul.f32 %v1254, %v1108
    %v1317 = vmul.f32 %v1258, %v1109
    %v1318 = vmul.f32 %v1265, %v1110
    %v1319 = vmul.f32 %v1269, %v1111
    %v1320 = vmul.f32 %v1276, %v1112
    %v1321 = vmul.f32 %v1280, %v1113
    %v1322 = vmul.f32 %v1287, %v1114
    %v1323 = vmul.f32 %v1291, %v1115
    %v1324 = vsel %vm588, %v1292, 0.0
    %v1325 = vsel %vm588, %v1293, 0.0
    %v1326 = vadd.f32 %v1324, %v1325
    %v1327 = vrot.slane %v1326, 4
    %v1328 = vadd.f32 %v1326, %v1327
    %v1329 = vrot.slane %v1328, 2
    %v1330 = vadd.f32 %v1328, %v1329
    %v1331 = vrot.slane %v1330, 1
    %v1332 = vadd.f32 %v1330, %v1331
    %v1333 = vsel %vm588, %v1294, 0.0
    %v1334 = vsel %vm588, %v1295, 0.0
    %v1335 = vadd.f32 %v1333, %v1334
    %v1336 = vrot.slane %v1335, 4
    %v1337 = vadd.f32 %v1335, %v1336
    %v1338 = vrot.slane %v1337, 2
    %v1339 = vadd.f32 %v1337, %v1338
    %v1340 = vrot.slane %v1339, 1
    %v1341 = vadd.f32 %v1339, %v1340
    %v1342 = vsel %vm588, %v1296, 0.0
    %v1343 = vsel %vm588, %v1297, 0.0
    %v1344 = vadd.f32 %v1342, %v1343
    %v1345 = vrot.slane %v1344, 4
    %v1346 = vadd.f32 %v1344, %v1345
    %v1347 = vrot.slane %v1346, 2
    %v1348 = vadd.f32 %v1346, %v1347
    %v1349 = vrot.slane %v1348, 1
    %v1350 = vadd.f32 %v1348, %v1349
    %v1351 = vsel %vm588, %v1298, 0.0
    %v1352 = vsel %vm588, %v1299, 0.0
    %v1353 = vadd.f32 %v1351, %v1352
    %v1354 = vrot.slane %v1353, 4
    %v1355 = vadd.f32 %v1353, %v1354
    %v1356 = vrot.slane %v1355, 2
    %v1357 = vadd.f32 %v1355, %v1356
    %v1358 = vrot.slane %v1357, 1
    %v1359 = vadd.f32 %v1357, %v1358
    %v1360 = vsel %vm588, %v1300, 0.0
    %v1361 = vsel %vm588, %v1301, 0.0
    %v1362 = vadd.f32 %v1360, %v1361
    %v1363 = vrot.slane %v1362, 4
    %v1364 = vadd.f32 %v1362, %v1363
    %v1365 = vrot.slane %v1364, 2
    %v1366 = vadd.f32 %v1364, %v1365
    %v1367 = vrot.slane %v1366, 1
    %v1368 = vadd.f32 %v1366, %v1367
    %v1369 = vsel %vm588, %v1302, 0.0
    %v1370 = vsel %vm588, %v1303, 0.0
    %v1371 = vadd.f32 %v1369, %v1370
    %v1372 = vrot.slane %v1371, 4
    %v1373 = vadd.f32 %v1371, %v1372
    %v1374 = vrot.slane %v1373, 2
    %v1375 = vadd.f32 %v1373, %v1374
    %v1376 = vrot.slane %v1375, 1
    %v1377 = vadd.f32 %v1375, %v1376
    %v1378 = vsel %vm588, %v1304, 0.0
    %v1379 = vsel %vm588, %v1305, 0.0
    %v1380 = vadd.f32 %v1378, %v1379
    %v1381 = vrot.slane %v1380, 4
    %v1382 = vadd.f32 %v1380, %v1381
    %v1383 = vrot.slane %v1382, 2
    %v1384 = vadd.f32 %v1382, %v1383
    %v1385 = vrot.slane %v1384, 1
    %v1386 = vadd.f32 %v1384, %v1385
    %v1387 = vsel %vm588, %v1306, 0.0
    %v1388 = vsel %vm588, %v1307, 0.0
    %v1389 = vadd.f32 %v1387, %v1388
    %v1390 = vrot.slane %v1389, 4
    %v1391 = vadd.f32 %v1389, %v1390
    %v1392 = vrot.slane %v1391, 2
    %v1393 = vadd.f32 %v1391, %v1392
    %v1394 = vrot.slane %v1393, 1
    %v1395 = vadd.f32 %v1393, %v1394
    %v1396 = vsel %vm588, %v1308, 0.0
    %v1397 = vsel %vm588, %v1309, 0.0
    %v1398 = vadd.f32 %v1396, %v1397
    %v1399 = vrot.slane %v1398, 4
    %v1400 = vadd.f32 %v1398, %v1399
    %v1401 = vrot.slane %v1400, 2
    %v1402 = vadd.f32 %v1400, %v1401
    %v1403 = vrot.slane %v1402, 1
    %v1404 = vadd.f32 %v1402, %v1403
    %v1405 = vsel %vm588, %v1310, 0.0
    %v1406 = vsel %vm588, %v1311, 0.0
    %v1407 = vadd.f32 %v1405, %v1406
    %v1408 = vrot.slane %v1407, 4
    %v1409 = vadd.f32 %v1407, %v1408
    %v1410 = vrot.slane %v1409, 2
    %v1411 = vadd.f32 %v1409, %v1410
    %v1412 = vrot.slane %v1411, 1
    %v1413 = vadd.f32 %v1411, %v1412
    %v1414 = vsel %vm588, %v1312, 0.0
    %v1415 = vsel %vm588, %v1313, 0.0
    %v1416 = vadd.f32 %v1414, %v1415
    %v1417 = vrot.slane %v1416, 4
    %v1418 = vadd.f32 %v1416, %v1417
    %v1419 = vrot.slane %v1418, 2
    %v1420 = vadd.f32 %v1418, %v1419
    %v1421 = vrot.slane %v1420, 1
    %v1422 = vadd.f32 %v1420, %v1421
    %v1423 = vsel %vm588, %v1314, 0.0
    %v1424 = vsel %vm588, %v1315, 0.0
    %v1425 = vadd.f32 %v1423, %v1424
    %v1426 = vrot.slane %v1425, 4
    %v1427 = vadd.f32 %v1425, %v1426
    %v1428 = vrot.slane %v1427, 2
    %v1429 = vadd.f32 %v1427, %v1428
    %v1430 = vrot.slane %v1429, 1
    %v1431 = vadd.f32 %v1429, %v1430
    %v1432 = vsel %vm588, %v1316, 0.0
    %v1433 = vsel %vm588, %v1317, 0.0
    %v1434 = vadd.f32 %v1432, %v1433
    %v1435 = vrot.slane %v1434, 4
    %v1436 = vadd.f32 %v1434, %v1435
    %v1437 = vrot.slane %v1436, 2
    %v1438 = vadd.f32 %v1436, %v1437
    %v1439 = vrot.slane %v1438, 1
    %v1440 = vadd.f32 %v1438, %v1439
    %v1441 = vsel %vm588, %v1318, 0.0
    %v1442 = vsel %vm588, %v1319, 0.0
    %v1443 = vadd.f32 %v1441, %v1442
    %v1444 = vrot.slane %v1443, 4
    %v1445 = vadd.f32 %v1443, %v1444
    %v1446 = vrot.slane %v1445, 2
    %v1447 = vadd.f32 %v1445, %v1446
    %v1448 = vrot.slane %v1447, 1
    %v1449 = vadd.f32 %v1447, %v1448
    %v1450 = vsel %vm588, %v1320, 0.0
    %v1451 = vsel %vm588, %v1321, 0.0
    %v1452 = vadd.f32 %v1450, %v1451
    %v1453 = vrot.slane %v1452, 4
    %v1454 = vadd.f32 %v1452, %v1453
    %v1455 = vrot.slane %v1454, 2
    %v1456 = vadd.f32 %v1454, %v1455
    %v1457 = vrot.slane %v1456, 1
    %v1458 = vadd.f32 %v1456, %v1457
    %v1459 = vsel %vm588, %v1322, 0.0
    %v1460 = vsel %vm588, %v1323, 0.0
    %v1461 = vadd.f32 %v1459, %v1460
    %v1462 = vrot.slane %v1461, 4
    %v1463 = vadd.f32 %v1461, %v1462
    %v1464 = vrot.slane %v1463, 2
    %v1465 = vadd.f32 %v1463, %v1464
    %v1466 = vrot.slane %v1465, 1
    %v1467 = vadd.f32 %v1465, %v1466
    %v1468 = vadd.f32 %v1332, 0.0
    %v1469 = vadd.f32 %v1341, 0.0
    %v1470 = vadd.f32 %v1350, 0.0
    %v1471 = vadd.f32 %v1359, 0.0
    %v1472 = vadd.f32 %v1368, 0.0
    %v1473 = vadd.f32 %v1377, 0.0
    %v1474 = vadd.f32 %v1386, 0.0
    %v1475 = vadd.f32 %v1395, 0.0
    %v1476 = vadd.f32 %v1404, 0.0
    %v1477 = vadd.f32 %v1413, 0.0
    %v1478 = vadd.f32 %v1422, 0.0
    %v1479 = vadd.f32 %v1431, 0.0
    %v1480 = vadd.f32 %v1440, 0.0
    %v1481 = vadd.f32 %v1449, 0.0
    %v1482 = vadd.f32 %v1458, 0.0
    %v1483 = vadd.f32 %v1467, 0.0
    %v1500 = vsel %vm1057, %v1469, %v1468
    %v1501 = vsel %vm1059, %v1470, %v1500
    %v1502 = vsel %vm1061, %v1471, %v1501
    %v1503 = vsel %vm1063, %v1472, %v1502
    %v1504 = vsel %vm1065, %v1473, %v1503
    %v1505 = vsel %vm1067, %v1474, %v1504
    %v1506 = vsel %vm1069, %v1475, %v1505
    %v1507 = vsel %vm1057, %v1477, %v1476
    %v1508 = vsel %vm1059, %v1478, %v1507
    %v1509 = vsel %vm1061, %v1479, %v1508
    %v1510 = vsel %vm1063, %v1480, %v1509
    %v1511 = vsel %vm1065, %v1481, %v1510
    %v1512 = vsel %vm1067, %v1482, %v1511
    %v1513 = vsel %vm1069, %v1483, %v1512
    %1516 = vst.msk [vmem:[#allocation8] sm:$0xff] %vm588, %v1506
    %1517 = vst.msk [vmem:[#allocation8 + $0x8] sm:$0xff] %vm588, %v1513
    // Predicated region
    $region30: #{tpu_custom_call.1} parent=1 // pred_check
      _
    $region31: #{tpu_custom_call.1} parent=1 // pred_check_branch
      %1519 = sbr.rel (0) target = $region33
    $region32: #{tpu_custom_call.1} parent=1 // pred_region
      %s1521 = ssub.s32 256, 256
      %1522 = vsyncadd [#allocation4], %s1521
      %s1523 = sshll.u32 [#allocation8], 4
      %s1524 = int_to_ptr.vmem [resolvable:$true] %s1523
      %1529 = dma.vmem_to_hbm [thread:$0]  %s1524, 256, %s4, [#allocation4], 128, 128, 8
    $region33: #{tpu_custom_call.1} parent=1 // pred_fallthru
      _
    // Predicated region
    $region34: #{tpu_custom_call.1} parent=1 // pred_check
      _
    $region35: #{tpu_custom_call.1} parent=1 // pred_check_branch
      %1531 = sbr.rel (0) target = $region37
    $region36: #{tpu_custom_call.1} parent=1 // pred_region
      %1532 = dma.done [#allocation4], 256
    $region37: #{tpu_custom_call.1} parent=1 // pred_fallthru
      _
    %1533 = vsyncpa [#allocation3], 1
    %1534 = vsyncpa [#allocation6], 1
    %1535 = vsyncpa [#allocation4], 1

</llo_original>
